<compile_context>
chip_gen: v7x
topology: tpu7x:2x2x1
jax: 0.10.0
libtpu: 0.0.40
codegen_flags: <defaults>
</compile_context>

<pallas_src>
import math
import functools

import jax
import jax.numpy as jnp
from jax.experimental import pallas as pl
from jax.experimental.pallas import tpu as pltpu

_LANE = 128
_VMEM_BUDGET = 20 * 1024 * 1024          # conservative working-set target
_SUP_RESIDENT_BUDGET = 8 * 1024 * 1024   # max bytes for a VMEM-resident support
_VMEM_LIMIT_BYTES = 48 * 1024 * 1024     # scoped limit; safe on v5e/v6e/v7x


def _round_up(x: int, m: int) -> int:
    return ((x + m - 1) // m) * m


def _pick_tile(total: int, cap: int) -> int:
    """Largest multiple of 128 that divides `total` (a 128-multiple), <= cap."""
    cap = max(_LANE, min(cap, total))
    best = _LANE
    for t in range(_LANE, cap + 1, _LANE):
        if total % t == 0:
            best = t
    return best


def _gcn_agg_kernel(adj_ref, sup_ref, bias_ref, o_ref, *scratch,
                    tk, tf, sup_resident, compute_dtype):
    """One (i, j, k) grid step of  out = tanh(adj @ support + bias).

    adj_ref  : (TM, TK)            adjacency tile (cast to compute dtype here)
    sup_ref  : (N_pad, Fout_pad)   VMEM-resident support   (sup_resident=True)
               (TK, TF)            streamed support tile   (sup_resident=False)
    bias_ref : (1, TF)             f32 bias tile
    o_ref    : (TM, TF)            output tile (resident across k)
    scratch  : optional (TM, TF) f32 accumulator (only when o_ref is not f32)
    """
    j = pl.program_id(1)
    k = pl.program_id(2)
    acc_ref = scratch[0] if scratch else o_ref   # f32 output accumulates in place

    @pl.when(k == 0)
    def _init():
        acc_ref[...] = jnp.zeros_like(acc_ref)

    a = adj_ref[...].astype(compute_dtype)
    if sup_resident:
        r0 = pl.multiple_of(k * tk, tk)
        c0 = pl.multiple_of(j * tf, tf)
        s = sup_ref[pl.ds(r0, tk), pl.ds(c0, tf)]
    else:
        s = sup_ref[...]

    acc_ref[...] += jnp.dot(a, s, preferred_element_type=jnp.float32)

    @pl.when(k == pl.num_programs(2) - 1)
    def _finalize():
        o_ref[...] = jnp.tanh(acc_ref[...] + bias_ref[...]).astype(o_ref.dtype)


@functools.partial(jax.jit, static_argnames=(
    "compute_dtype", "out_dtype", "tile_m", "tile_k", "tile_f",
    "support_resident"))
def graph_convolution(inputs, adj, weight, bias=None, *,
                      compute_dtype=jnp.bfloat16, out_dtype=None,
                      tile_m=512, tile_k=2048, tile_f=512,
                      support_resident=None):
    """Pallas forward of GraphConvolution: tanh(adj @ (inputs @ weight) + bias).

    Note: casting the adjacency to bf16 (compute_dtype default) quantizes edge
    weights to ~8 mantissa bits; pass compute_dtype=jnp.float32 for sensitive
    graphs (exact, slower).  `adj` may be pre-cast to compute_dtype by the
    caller (adjacency is static per graph) to avoid any in-call conversion.
    """
    N, Fin = inputs.shape
    fin_w, Fout = weight.shape
    assert Fin == fin_w and adj.shape == (N, N)

    compute_dtype = jnp.dtype(compute_dtype)
    out_dtype = jnp.dtype(out_dtype) if out_dtype is not None else inputs.dtype

    # ---- Stage 1 (wrapper): support = X @ W in f32 (small, done once). ------
    support = jnp.dot(inputs.astype(jnp.float32), weight.astype(jnp.float32),
                      preferred_element_type=jnp.float32)

    # ---- Padded extents (128-aligned; zero padding is exact for this op). ---
    n128 = _round_up(N, _LANE)
    fout_pad = _round_up(Fout, _LANE)

    # ---- Tile selection: tiles divide the 128-aligned extents exactly. ------
    tm_cap = min(tile_m, n128)
    if n128 >= 2 * _LANE:                       # >= 2 row blocks for v7x megacore
        tm_cap = min(tm_cap, max(_LANE, ((n128 // 2) // _LANE) * _LANE))
    tm = _pick_tile(n128, tm_cap)
    tk = _pick_tile(n128, min(tile_k, n128))
    tf = _pick_tile(fout_pad, min(tile_f, fout_pad))

    # ---- Adjacency: avoid a separate pad/cast pass whenever possible. -------
    if N == n128:
        adj_in = adj                            # zero-copy; cast in-kernel
    else:
        adj_in = jnp.zeros((n128, n128), compute_dtype).at[:N, :N].set(
            adj.astype(compute_dtype))          # single fused pad + cast

    # ---- Support / bias (tiny; pad & cast once). ----------------------------
    if N == n128 and Fout == fout_pad:
        sup_in = support.astype(compute_dtype)
    else:
        sup_in = jnp.zeros((n128, fout_pad), compute_dtype).at[:N, :Fout].set(
            support.astype(compute_dtype))
    if bias is not None:
        bias_in = jnp.zeros((1, fout_pad), jnp.float32).at[0, :Fout].set(
            bias.astype(jnp.float32))
    else:
        bias_in = jnp.zeros((1, fout_pad), jnp.float32)

    # ---- VMEM budgeting: support residency + tile fitting. ------------------
    use_acc = out_dtype != jnp.dtype(jnp.float32)
    adj_isz = jnp.dtype(adj_in.dtype).itemsize
    sup_isz = compute_dtype.itemsize
    out_isz = out_dtype.itemsize

    forced = support_resident is not None
    sup_res = (bool(support_resident) if forced else
               2 * n128 * fout_pad * sup_isz <= _SUP_RESIDENT_BUDGET)

    def vmem_bytes(tm_, tk_, tf_, res):
        adj_b = 2 * tm_ * tk_ * adj_isz
        sup_b = (2 * n128 * fout_pad if res else 2 * tk_ * tf_) * sup_isz
        out_b = 2 * tm_ * tf_ * out_isz
        acc_b = tm_ * tf_ * 4 if use_acc else 0
        return adj_b + sup_b + out_b + acc_b + 2 * tf_ * 4

    while vmem_bytes(tm, tk, tf, sup_res) > _VMEM_BUDGET:
        if tk > _LANE:
            tk = _pick_tile(n128, tk - _LANE)
        elif tf > _LANE:
            tf = _pick_tile(fout_pad, tf - _LANE)
        elif tm > _LANE:
            tm = _pick_tile(n128, tm - _LANE)
        elif sup_res and not forced:
            sup_res = False
        else:
            break

    grid = (n128 // tm, fout_pad // tf, n128 // tk)

    if sup_res:
        sup_spec = pl.BlockSpec((n128, fout_pad), lambda i, j, k: (0, 0))
    else:
        sup_spec = pl.BlockSpec((tk, tf), lambda i, j, k: (k, j))

    kernel = functools.partial(_gcn_agg_kernel, tk=tk, tf=tf,
                               sup_resident=sup_res, compute_dtype=compute_dtype)
    scratch = [pltpu.VMEM((tm, tf), jnp.float32)] if use_acc else []

    out_p = pl.pallas_call(
        kernel,
        out_shape=jax.ShapeDtypeStruct((n128, fout_pad), out_dtype),
        grid_spec=pltpu.PrefetchScalarGridSpec(
            num_scalar_prefetch=0,
            grid=grid,
            in_specs=[
                pl.BlockSpec((tm, tk), lambda i, j, k: (i, k)),   # adjacency tile
                sup_spec,                                         # support
                pl.BlockSpec((1, tf), lambda i, j, k: (0, j)),    # bias tile
            ],
            out_specs=pl.BlockSpec((tm, tf), lambda i, j, k: (i, j)),
            scratch_shapes=scratch,
        ),
        compiler_params=pltpu.CompilerParams(
            dimension_semantics=("parallel", "parallel", "arbitrary"),
            vmem_limit_bytes=_VMEM_LIMIT_BYTES,
        ),
    )(adj_in, sup_in, bias_in)

    return out_p[:N, :Fout]


def init_params(key, in_features, out_features, bias=True):
    """Deterministic re-implementation of GraphConvolution.reset_parameters:
    uniform(-stdv, stdv) with stdv = 1/sqrt(out_features)."""
    stdv = 1.0 / math.sqrt(out_features)
    kw, kb = jax.random.split(key)
    weight = jax.random.uniform(kw, (in_features, out_features),
                                minval=-stdv, maxval=stdv, dtype=jnp.float32)
    b = None
    if bias:
        b = jax.random.uniform(kb, (out_features,),
                               minval=-stdv, maxval=stdv, dtype=jnp.float32)
    return weight, b


if __name__ == "__main__":
    key = jax.random.PRNGKey(0)
    k_x, k_adj, k_p, k_x2, k_adj2, k_p2 = jax.random.split(key, 6)

    # ---------------- Case 1: small GCN layer (module-scale shapes). ---------
    N, FIN, FOUT = 16, 8, 32
    inputs = jax.random.normal(k_x, (N, FIN), dtype=jnp.float32)
    raw = jax.random.uniform(k_adj, (N, N), dtype=jnp.float32)
    adj = raw / jnp.sum(raw, axis=1, keepdims=True)   # row-normalized dense adjacency
    weight, bias = init_params(k_p, FIN, FOUT, bias=True)

    ref = jnp.tanh(adj @ (inputs @ weight) + bias[None, :])
    ref_nb = jnp.tanh(adj @ (inputs @ weight))

    # bf16 MXU operands, f32 output — loose tolerance.
    out = jax.block_until_ready(graph_convolution(inputs, adj, weight, bias))
    assert out.shape == (N, FOUT)
    assert jnp.allclose(out, ref, atol=2e-2, rtol=2e-2), \
        float(jnp.max(jnp.abs(out - ref)))

    # bf16 output path (exercises the f32 accumulator scratch).
    out_b = jax.block_until_ready(
        graph_convolution(inputs, adj, weight, bias, out_dtype=jnp.bfloat16))
    assert out_b.dtype == jnp.bfloat16
    assert jnp.allclose(out_b.astype(jnp.float32), ref, atol=2e-2, rtol=2e-2)

    # f32 compute path — tight tolerance (validates kernel structure).
    out32 = jax.block_until_ready(
        graph_convolution(inputs, adj, weight, bias, compute_dtype=jnp.float32))
    assert jnp.allclose(out32, ref, atol=1e-5, rtol=1e-5), \
        float(jnp.max(jnp.abs(out32 - ref)))

    # No-bias path.
    out_nb = jax.block_until_ready(
        graph_convolution(inputs, adj, weight, None, compute_dtype=jnp.float32))
    assert jnp.allclose(out_nb, ref_nb, atol=1e-5, rtol=1e-5)

    # ------- Case 2: multi-tile grid (i, j, k all > 1), 128-aligned N. -------
    N2, FIN2, FOUT2 = 384, 64, 256
    inputs2 = jax.random.normal(k_x2, (N2, FIN2), dtype=jnp.float32)
    raw2 = jax.random.uniform(k_adj2, (N2, N2), dtype=jnp.float32)
    adj2 = raw2 / jnp.sum(raw2, axis=1, keepdims=True)
    weight2, bias2 = init_params(k_p2, FIN2, FOUT2, bias=True)
    ref2 = jnp.tanh(adj2 @ (inputs2 @ weight2) + bias2[None, :])

    # Resident-support path, forced small tiles -> grid (3, 2, 3).
    out2 = jax.block_until_ready(graph_convolution(
        inputs2, adj2, weight2, bias2, compute_dtype=jnp.float32,
        tile_m=128, tile_k=128, tile_f=128))
    assert out2.shape == (N2, FOUT2)
    assert jnp.allclose(out2, ref2, atol=1e-4, rtol=1e-4), \
        float(jnp.max(jnp.abs(out2 - ref2)))

    # Streamed-support path.
    out2s = jax.block_until_ready(graph_convolution(
        inputs2, adj2, weight2, bias2, compute_dtype=jnp.float32,
        tile_m=128, tile_k=128, tile_f=128, support_resident=False))
    assert jnp.allclose(out2s, ref2, atol=1e-4, rtol=1e-4)

    print("KERNEL_OK")
</pallas_src>

<mosaic_0001>
module attributes {stable_mosaic.version = 11 : i64} {
  func.func @_gcn_agg_kernel(%arg0: i32, %arg1: i32, %arg2: i32, %arg3: memref<128x128xbf16, #tpu.memory_space<vmem>>, %arg4: memref<128x128xbf16, #tpu.memory_space<vmem>>, %arg5: memref<1x128xf32, #tpu.memory_space<vmem>>, %arg6: memref<128x128xf32, #tpu.memory_space<vmem>>) attributes {dimension_semantics = [#tpu.dimension_semantics<parallel>, #tpu.dimension_semantics<parallel>, #tpu.dimension_semantics<arbitrary>], iteration_bounds = array<i64: 1, 1, 1>, scalar_prefetch = 0 : i64, scratch_operands = 0 : i64, tpu.core_type = #tpu.core_type<tc>, window_params = [{transform_indices = @transform_0, window_bounds = array<i64: 128, 128>}, {pipeline_mode = #tpu.pipeline_mode<synchronous>, transform_indices = @transform_1, window_bounds = array<i64: 128, 128>}, {transform_indices = @transform_2, window_bounds = array<i64: 1, 128>}, {transform_indices = @transform_3, window_bounds = array<i64: 128, 128>}]} {
    %c0_i32 = arith.constant 0 : i32
    %0 = arith.cmpi eq, %arg2, %c0_i32 : i32
    %1 = arith.extui %0 : i1 to i32
    %c0_i32_0 = arith.constant 0 : i32
    %2 = arith.cmpi ne, %1, %c0_i32_0 : i32
    scf.if %2 {
      %cst_9 = arith.constant 0.000000e+00 : f32
      %18 = vector.broadcast %cst_9 : f32 to vector<128x128xf32>
      %c0_10 = arith.constant 0 : index
      %c0_11 = arith.constant 0 : index
      %19 = vector.load %arg6[%c0_10, %c0_11] : memref<128x128xf32, #tpu.memory_space<vmem>>, vector<128x128xf32>
      tpu.vector_store %arg6[%c0_10, %c0_11], %18 {strides = array<i32>} : memref<128x128xf32, #tpu.memory_space<vmem>>, vector<128x128xf32>,
    } else {
    }
    %c0 = arith.constant 0 : index
    %c0_1 = arith.constant 0 : index
    %3 = vector.load %arg3[%c0, %c0_1] : memref<128x128xbf16, #tpu.memory_space<vmem>>, vector<128x128xbf16>
    %c128_i32 = arith.constant 128 : i32
    %4 = arith.muli %arg2, %c128_i32 : i32
    %5 = tpu.assume_multiple %4, 128 : i32
    %c128_i32_2 = arith.constant 128 : i32
    %6 = arith.muli %arg1, %c128_i32_2 : i32
    %7 = tpu.assume_multiple %6, 128 : i32
    %8 = arith.index_cast %5 : i32 to index
    %9 = arith.index_cast %7 : i32 to index
    %10 = vector.load %arg4[%8, %9] : memref<128x128xbf16, #tpu.memory_space<vmem>>, vector<128x128xbf16>
    %c0_3 = arith.constant 0 : index
    %c0_4 = arith.constant 0 : index
    %11 = vector.load %arg6[%c0_3, %c0_4] : memref<128x128xf32, #tpu.memory_space<vmem>>, vector<128x128xf32>
    %cst = arith.constant dense<0.000000e+00> : vector<128x128xf32>
    %12 = tpu.matmul %3, %10, %cst {dimension_numbers = #tpu.dot_dimension_numbers<[1], [0], [0], [1], [0, 0, 1, 1], [], []>} : vector<128x128xbf16>, vector<128x128xbf16>, vector<128x128xf32> -> vector<128x128xf32>
    %13 = arith.addf %11, %12 : vector<128x128xf32>
    %c0_5 = arith.constant 0 : index
    %c0_6 = arith.constant 0 : index
    %14 = vector.load %arg6[%c0_5, %c0_6] : memref<128x128xf32, #tpu.memory_space<vmem>>, vector<128x128xf32>
    tpu.vector_store %arg6[%c0_5, %c0_6], %13 {strides = array<i32>} : memref<128x128xf32, #tpu.memory_space<vmem>>, vector<128x128xf32>,
    %c0_i32_7 = arith.constant 0 : i32
    %15 = arith.cmpi eq, %arg2, %c0_i32_7 : i32
    %16 = arith.extui %15 : i1 to i32
    %c0_i32_8 = arith.constant 0 : i32
    %17 = arith.cmpi ne, %16, %c0_i32_8 : i32
    scf.if %17 {
      %c0_9 = arith.constant 0 : index
      %c0_10 = arith.constant 0 : index
      %18 = vector.load %arg6[%c0_9, %c0_10] : memref<128x128xf32, #tpu.memory_space<vmem>>, vector<128x128xf32>
      %c0_11 = arith.constant 0 : index
      %c0_12 = arith.constant 0 : index
      %19 = vector.load %arg5[%c0_11, %c0_12] : memref<1x128xf32, #tpu.memory_space<vmem>>, vector<1x128xf32>
      %20 = vector.broadcast %19 : vector<1x128xf32> to vector<128x128xf32>
      %21 = arith.addf %18, %20 : vector<128x128xf32>
      %22 = math.tanh %21 : vector<128x128xf32>
      %c0_13 = arith.constant 0 : index
      %c0_14 = arith.constant 0 : index
      %23 = vector.load %arg6[%c0_13, %c0_14] : memref<128x128xf32, #tpu.memory_space<vmem>>, vector<128x128xf32>
      tpu.vector_store %arg6[%c0_13, %c0_14], %22 {strides = array<i32>} : memref<128x128xf32, #tpu.memory_space<vmem>>, vector<128x128xf32>,
    } else {
    }
    return
  }
  func.func @transform_0(%arg0: i32, %arg1: i32, %arg2: i32) -> (i32, i32) {
    %c0_i32 = arith.constant 0 : i32
    return %arg0, %arg2 : i32, i32
  }
  func.func @transform_1(%arg0: i32, %arg1: i32, %arg2: i32) -> (i32, i32) {
    %c0_i32 = arith.constant 0 : i32
    %c0_i32_0 = arith.constant 0 : i32
    %c0_i32_1 = arith.constant 0 : i32
    return %c0_i32, %c0_i32_0 : i32, i32
  }
  func.func @transform_2(%arg0: i32, %arg1: i32, %arg2: i32) -> (i32, i32) {
    %c0_i32 = arith.constant 0 : i32
    %c0_i32_0 = arith.constant 0 : i32
    return %c0_i32, %arg1 : i32, i32
  }
  func.func @transform_3(%arg0: i32, %arg1: i32, %arg2: i32) -> (i32, i32) {
    %c0_i32 = arith.constant 0 : i32
    return %arg0, %arg1 : i32, i32
  }
}

</mosaic_0001>

<llo_original>
// kernel: graph_convolution.1
$region0: #{graph_convolution.1}
  #allocation0 [shape = 'u32[]', space=smem, size = 0x4, offset = 0x4, fixed_abs, tag = 'smem constant byte address 0x4 - core index']
  #allocation1 [shape = 'u32[144,128]{1,0:T(1,128)}', space=vmem, size = 0x12000, scoped, tag = 'internal scratch']
  %s0 = inlined_call_operand.vmem [shape: bf16[128,128], index: 0, kind: input, shape index: {}]
  %s1 = inlined_call_operand.vmem [shape: bf16[128,128], index: 1, kind: input, shape index: {}]
  %s2 = inlined_call_operand.vmem [shape: f32[1,128], index: 2, kind: input, shape index: {}]
  %s3 = inlined_call_operand.vmem [shape: f32[128,128], index: 3, kind: output, shape index: {}]
  %s4 = sld [smem:[#allocation0]]
  $region30: #{graph_convolution.1} parent=0
    _
  %s6 = ssub.s32 1, %s4
  %s7 = scalar_select 0, %s6, %s4
  // Predicated region
  $region2: #{graph_convolution.1} parent=0 // pred_check
    _
  $region3: #{graph_convolution.1} parent=0 // pred_check_branch
    %9 = sbr.rel (0) target = $region5
  $region4: #{graph_convolution.1} parent=0 // pred_region
    _
  $region5: #{graph_convolution.1} parent=0 // pred_fallthru
    _
  // Predicated region
  $region6: #{graph_convolution.1} parent=0 // pred_check
    _
  $region7: #{graph_convolution.1} parent=0 // pred_check_branch
    %11 = sbr.rel (0) target = $region9
  $region8: #{graph_convolution.1} parent=0 // pred_region
    _
  $region9: #{graph_convolution.1} parent=0 // pred_fallthru
    _
  // Predicated region
  $region10: #{graph_convolution.1} parent=0 // pred_check
    _
  $region11: #{graph_convolution.1} parent=0 // pred_check_branch
    %13 = sbr.rel (0) target = $region13
  $region12: #{graph_convolution.1} parent=0 // pred_region
    _
  $region13: #{graph_convolution.1} parent=0 // pred_fallthru
    _
  %p15 = scmp.eq.s32.totalorder 0, 0
  // Predicated region
  $region14: #{graph_convolution.1} parent=0 // pred_check
    %p16 = pneg %p15
  $region15: #{graph_convolution.1} parent=0 // pred_check_branch
    %18 = sbr.rel (%p16) target = $region17
  $region16: #{graph_convolution.1} parent=0 // pred_region
    %19 = vst [vmem:[%s3] sm:$0xff] 0.0
    %20 = vst [vmem:[%s3 + $0x8] sm:$0xff] 0.0
    %21 = vst [vmem:[%s3 + $0x10] sm:$0xff] 0.0
    %22 = vst [vmem:[%s3 + $0x18] sm:$0xff] 0.0
    %23 = vst [vmem:[%s3 + $0x20] sm:$0xff] 0.0
    %24 = vst [vmem:[%s3 + $0x28] sm:$0xff] 0.0
    %25 = vst [vmem:[%s3 + $0x30] sm:$0xff] 0.0
    %26 = vst [vmem:[%s3 + $0x38] sm:$0xff] 0.0
    %27 = vst [vmem:[%s3 + $0x40] sm:$0xff] 0.0
    %28 = vst [vmem:[%s3 + $0x48] sm:$0xff] 0.0
    %29 = vst [vmem:[%s3 + $0x50] sm:$0xff] 0.0
    %30 = vst [vmem:[%s3 + $0x58] sm:$0xff] 0.0
    %31 = vst [vmem:[%s3 + $0x60] sm:$0xff] 0.0
    %32 = vst [vmem:[%s3 + $0x68] sm:$0xff] 0.0
    %33 = vst [vmem:[%s3 + $0x70] sm:$0xff] 0.0
    %34 = vst [vmem:[%s3 + $0x78] sm:$0xff] 0.0
  $region17: #{graph_convolution.1} parent=0 // pred_fallthru
    _
  %v35 = vld [vmem:[%s0] sm:$0xf]
  %v36 = vld [vmem:[%s0 + $0x4] sm:$0xf]
  %v37 = vld [vmem:[%s0 + $0x8] sm:$0xf]
  %v38 = vld [vmem:[%s0 + $0xc] sm:$0xf]
  %v39 = vld [vmem:[%s0 + $0x10] sm:$0xf]
  %v40 = vld [vmem:[%s0 + $0x14] sm:$0xf]
  %v41 = vld [vmem:[%s0 + $0x18] sm:$0xf]
  %v42 = vld [vmem:[%s0 + $0x1c] sm:$0xf]
  %v43 = vld [vmem:[%s0 + $0x20] sm:$0xf]
  %v44 = vld [vmem:[%s0 + $0x24] sm:$0xf]
  %v45 = vld [vmem:[%s0 + $0x28] sm:$0xf]
  %v46 = vld [vmem:[%s0 + $0x2c] sm:$0xf]
  %v47 = vld [vmem:[%s0 + $0x30] sm:$0xf]
  %v48 = vld [vmem:[%s0 + $0x34] sm:$0xf]
  %v49 = vld [vmem:[%s0 + $0x38] sm:$0xf]
  %v50 = vld [vmem:[%s0 + $0x3c] sm:$0xf]
  %s51 = smul.u32 0, 128
  %s52 = smul.u32 0, 128
  %s53 = sshra.s32 %s52, 7
  %s54 = sand.u32 %s52, 127
  %s55 = sshra.s32 %s51, 3
  %s56 = sand.u32 %s51, 7
  %s57 = sadd.s32 %s53, %s55
  %s58 = smul.addr %s57, 4
  %s59 = scalar_lea.vmem %s1, %s58
  %v60 = vld [vmem:[%s59] sm:$0xf]
  %v61 = vld [vmem:[%s59 + $0x4] sm:$0xf]
  %v62 = vld [vmem:[%s59 + $0x8] sm:$0xf]
  %v63 = vld [vmem:[%s59 + $0xc] sm:$0xf]
  %v64 = vld [vmem:[%s59 + $0x10] sm:$0xf]
  %v65 = vld [vmem:[%s59 + $0x14] sm:$0xf]
  %v66 = vld [vmem:[%s59 + $0x18] sm:$0xf]
  %v67 = vld [vmem:[%s59 + $0x1c] sm:$0xf]
  %v68 = vld [vmem:[%s59 + $0x20] sm:$0xf]
  %v69 = vld [vmem:[%s59 + $0x24] sm:$0xf]
  %v70 = vld [vmem:[%s59 + $0x28] sm:$0xf]
  %v71 = vld [vmem:[%s59 + $0x2c] sm:$0xf]
  %v72 = vld [vmem:[%s59 + $0x30] sm:$0xf]
  %v73 = vld [vmem:[%s59 + $0x34] sm:$0xf]
  %v74 = vld [vmem:[%s59 + $0x38] sm:$0xf]
  %v75 = vld [vmem:[%s59 + $0x3c] sm:$0xf]
  %v76 = vld [vmem:[%s3] sm:$0xff]
  %v77 = vld [vmem:[%s3 + $0x8] sm:$0xff]
  %v78 = vld [vmem:[%s3 + $0x10] sm:$0xff]
  %v79 = vld [vmem:[%s3 + $0x18] sm:$0xff]
  %v80 = vld [vmem:[%s3 + $0x20] sm:$0xff]
  %v81 = vld [vmem:[%s3 + $0x28] sm:$0xff]
  %v82 = vld [vmem:[%s3 + $0x30] sm:$0xff]
  %v83 = vld [vmem:[%s3 + $0x38] sm:$0xff]
  %v84 = vld [vmem:[%s3 + $0x40] sm:$0xff]
  %v85 = vld [vmem:[%s3 + $0x48] sm:$0xff]
  %v86 = vld [vmem:[%s3 + $0x50] sm:$0xff]
  %v87 = vld [vmem:[%s3 + $0x58] sm:$0xff]
  %v88 = vld [vmem:[%s3 + $0x60] sm:$0xff]
  %v89 = vld [vmem:[%s3 + $0x68] sm:$0xff]
  %v90 = vld [vmem:[%s3 + $0x70] sm:$0xff]
  %v91 = vld [vmem:[%s3 + $0x78] sm:$0xff]
  %v108 = vunpack.c.l.b16 %v35
  %v109 = vunpack.c.l.b16 %v36
  %v110 = vunpack.c.l.b16 %v37
  %v111 = vunpack.c.l.b16 %v38
  %v112 = vunpack.c.l.b16 %v39
  %v113 = vunpack.c.l.b16 %v40
  %v114 = vunpack.c.l.b16 %v41
  %v115 = vunpack.c.l.b16 %v42
  %v116 = vunpack.c.l.b16 %v43
  %v117 = vunpack.c.l.b16 %v44
  %v118 = vunpack.c.l.b16 %v45
  %v119 = vunpack.c.l.b16 %v46
  %v120 = vunpack.c.l.b16 %v47
  %v121 = vunpack.c.l.b16 %v48
  %v122 = vunpack.c.l.b16 %v49
  %v123 = vunpack.c.l.b16 %v50
  %v124 = vpack.c.b16 %v109, %v108
  %v125 = vpack.c.b16 %v111, %v110
  %v126 = vpack.c.b16 %v113, %v112
  %v127 = vpack.c.b16 %v115, %v114
  %v128 = vpack.c.b16 %v117, %v116
  %v129 = vpack.c.b16 %v119, %v118
  %v130 = vpack.c.b16 %v121, %v120
  %v131 = vpack.c.b16 %v123, %v122
  %v156 = vunpack.c.l.b16 %v60
  %v157 = vunpack.c.l.b16 %v61
  %v158 = vunpack.c.l.b16 %v62
  %v159 = vunpack.c.l.b16 %v63
  %v160 = vunpack.c.l.b16 %v64
  %v161 = vunpack.c.l.b16 %v65
  %v162 = vunpack.c.l.b16 %v66
  %v163 = vunpack.c.l.b16 %v67
  %v164 = vunpack.c.l.b16 %v68
  %v165 = vunpack.c.l.b16 %v69
  %v166 = vunpack.c.l.b16 %v70
  %v167 = vunpack.c.l.b16 %v71
  %v168 = vunpack.c.l.b16 %v72
  %v169 = vunpack.c.l.b16 %v73
  %v170 = vunpack.c.l.b16 %v74
  %v171 = vunpack.c.l.b16 %v75
  %v172 = vpack.c.b16 %v157, %v156
  %v173 = vpack.c.b16 %v159, %v158
  %v174 = vpack.c.b16 %v161, %v160
  %v175 = vpack.c.b16 %v163, %v162
  %v176 = vpack.c.b16 %v165, %v164
  %v177 = vpack.c.b16 %v167, %v166
  %v178 = vpack.c.b16 %v169, %v168
  %v179 = vpack.c.b16 %v171, %v170
  %188 = vmatprep.subr.bf16.mxu0 0
  %189 = vmatpush1.bf16.msra.mxu0 %v172
  %190 = vmatprep.subr.bf16.mxu0 0
  %191 = vmatpush1.bf16.msra.mxu0 %v173
  %192 = vmatprep.subr.bf16.mxu0 0
  %193 = vmatpush1.bf16.msra.mxu0 %v174
  %194 = vmatprep.subr.bf16.mxu0 0
  %195 = vmatpush1.bf16.msra.mxu0 %v175
  %196 = vmatprep.subr.bf16.mxu0 0
  %197 = vmatpush1.bf16.msra.mxu0 %v176
  %198 = vmatprep.subr.bf16.mxu0 0
  %199 = vmatpush1.bf16.msra.mxu0 %v177
  %200 = vmatprep.subr.bf16.mxu0 0
  %201 = vmatpush1.bf16.msra.mxu0 %v178
  %202 = vmatprep.subr.bf16.mxu0 0
  %203 = vmatpush1.bf16.msra.mxu0 %v179
  %204 = vmatprep.subr.bf16.mxu0 0
  %205 = vmatpush1.bf16.msra.mxu0 0
  %206 = vmatprep.subr.bf16.mxu0 0
  %207 = vmatpush1.bf16.msra.mxu0 0
  %208 = vmatprep.subr.bf16.mxu0 0
  %209 = vmatpush1.bf16.msra.mxu0 0
  %210 = vmatprep.subr.bf16.mxu0 0
  %211 = vmatpush1.bf16.msra.mxu0 0
  %212 = vmatprep.subr.bf16.mxu0 0
  %213 = vmatpush1.bf16.msra.mxu0 0
  %214 = vmatprep.subr.bf16.mxu0 0
  %215 = vmatpush1.bf16.msra.mxu0 0
  %216 = vmatprep.subr.bf16.mxu0 0
  %217 = vmatpush1.bf16.msra.mxu0 0
  %218 = vmatprep.subr.bf16.mxu0 0
  %219 = vmatpush1.bf16.msra.mxu0 0
  %220 = vmatprep.mubr.bf16.mxu0 0
  %221 = vmatmul.mubr.bf16.gmra.mrb[0].mxu0 %v124
  %v222 = vpop.f32.mrb[0].mxu0
  %v223 = vadd.f32 0.0, %v222
  %v224 = vpop.f32.mrb[0].mxu0
  %v225 = vpop.f32.mrb[0].mxu0
  %v226 = vadd.f32 0.0, %v225
  %v227 = vpop.f32.mrb[0].mxu0
  %228 = vmatprep.mubr.bf16.mxu0 0
  %229 = vmatmul.mubr.bf16.gmra.mrb[0].mxu0 %v125
  %v230 = vpop.f32.mrb[0].mxu0
  %v231 = vadd.f32 0.0, %v230
  %v232 = vpop.f32.mrb[0].mxu0
  %v233 = vpop.f32.mrb[0].mxu0
  %v234 = vadd.f32 0.0, %v233
  %v235 = vpop.f32.mrb[0].mxu0
  %236 = vmatprep.mubr.bf16.mxu0 0
  %237 = vmatmul.mubr.bf16.gmra.mrb[0].mxu0 %v126
  %v238 = vpop.f32.mrb[0].mxu0
  %v239 = vadd.f32 0.0, %v238
  %v240 = vpop.f32.mrb[0].mxu0
  %v241 = vpop.f32.mrb[0].mxu0
  %v242 = vadd.f32 0.0, %v241
  %v243 = vpop.f32.mrb[0].mxu0
  %244 = vmatprep.mubr.bf16.mxu0 0
  %245 = vmatmul.mubr.bf16.gmra.mrb[0].mxu0 %v127
  %v246 = vpop.f32.mrb[0].mxu0
  %v247 = vadd.f32 0.0, %v246
  %v248 = vpop.f32.mrb[0].mxu0
  %v249 = vpop.f32.mrb[0].mxu0
  %v250 = vadd.f32 0.0, %v249
  %v251 = vpop.f32.mrb[0].mxu0
  %252 = vmatprep.mubr.bf16.mxu0 0
  %253 = vmatmul.mubr.bf16.gmra.mrb[0].mxu0 %v128
  %v254 = vpop.f32.mrb[0].mxu0
  %v255 = vadd.f32 0.0, %v254
  %v256 = vpop.f32.mrb[0].mxu0
  %v257 = vpop.f32.mrb[0].mxu0
  %v258 = vadd.f32 0.0, %v257
  %v259 = vpop.f32.mrb[0].mxu0
  %260 = vmatprep.mubr.bf16.mxu0 0
  %261 = vmatmul.mubr.bf16.gmra.mrb[0].mxu0 %v129
  %v262 = vpop.f32.mrb[0].mxu0
  %v263 = vadd.f32 0.0, %v262
  %v264 = vpop.f32.mrb[0].mxu0
  %v265 = vpop.f32.mrb[0].mxu0
  %v266 = vadd.f32 0.0, %v265
  %v267 = vpop.f32.mrb[0].mxu0
  %268 = vmatprep.mubr.bf16.mxu0 0
  %269 = vmatmul.mubr.bf16.gmra.mrb[0].mxu0 %v130
  %v270 = vpop.f32.mrb[0].mxu0
  %v271 = vadd.f32 0.0, %v270
  %v272 = vpop.f32.mrb[0].mxu0
  %v273 = vpop.f32.mrb[0].mxu0
  %v274 = vadd.f32 0.0, %v273
  %v275 = vpop.f32.mrb[0].mxu0
  %276 = vmatprep.mubr.bf16.mxu0 0
  %277 = vmatmul.mubr.bf16.gmra.mrb[0].mxu0 %v131
  %v278 = vpop.f32.mrb[0].mxu0
  %v279 = vadd.f32 0.0, %v278
  %v280 = vpop.f32.mrb[0].mxu0
  %v281 = vpop.f32.mrb[0].mxu0
  %v282 = vadd.f32 0.0, %v281
  %v283 = vpop.f32.mrb[0].mxu0
  %284 = vdwg.mxu0
  %v285 = vadd.f32 %v76, %v223
  %v286 = vadd.f32 %v77, %v226
  %v287 = vadd.f32 %v78, %v231
  %v288 = vadd.f32 %v79, %v234
  %v289 = vadd.f32 %v80, %v239
  %v290 = vadd.f32 %v81, %v242
  %v291 = vadd.f32 %v82, %v247
  %v292 = vadd.f32 %v83, %v250
  %v293 = vadd.f32 %v84, %v255
  %v294 = vadd.f32 %v85, %v258
  %v295 = vadd.f32 %v86, %v263
  %v296 = vadd.f32 %v87, %v266
  %v297 = vadd.f32 %v88, %v271
  %v298 = vadd.f32 %v89, %v274
  %v299 = vadd.f32 %v90, %v279
  %v300 = vadd.f32 %v91, %v282
  %301 = vst [vmem:[%s3] sm:$0xff] %v285
  %302 = vst [vmem:[%s3 + $0x8] sm:$0xff] %v286
  %303 = vst [vmem:[%s3 + $0x10] sm:$0xff] %v287
  %304 = vst [vmem:[%s3 + $0x18] sm:$0xff] %v288
  %305 = vst [vmem:[%s3 + $0x20] sm:$0xff] %v289
  %306 = vst [vmem:[%s3 + $0x28] sm:$0xff] %v290
  %307 = vst [vmem:[%s3 + $0x30] sm:$0xff] %v291
  %308 = vst [vmem:[%s3 + $0x38] sm:$0xff] %v292
  %309 = vst [vmem:[%s3 + $0x40] sm:$0xff] %v293
  %310 = vst [vmem:[%s3 + $0x48] sm:$0xff] %v294
  %311 = vst [vmem:[%s3 + $0x50] sm:$0xff] %v295
  %312 = vst [vmem:[%s3 + $0x58] sm:$0xff] %v296
  %313 = vst [vmem:[%s3 + $0x60] sm:$0xff] %v297
  %314 = vst [vmem:[%s3 + $0x68] sm:$0xff] %v298
  %315 = vst [vmem:[%s3 + $0x70] sm:$0xff] %v299
  %316 = vst [vmem:[%s3 + $0x78] sm:$0xff] %v300
  // Predicated region
  $region18: #{graph_convolution.1} parent=0 // pred_check
    %p317 = pneg %p15
  $region19: #{graph_convolution.1} parent=0 // pred_check_branch
    %319 = sbr.rel (%p317) target = $region21
  $region20: #{graph_convolution.1} parent=0 // pred_region
    %v320 = vld [vmem:[%s3] sm:$0xff]
    %v321 = vld [vmem:[%s3 + $0x8] sm:$0xff]
    %v322 = vld [vmem:[%s3 + $0x10] sm:$0xff]
    %v323 = vld [vmem:[%s3 + $0x18] sm:$0xff]
    %v324 = vld [vmem:[%s3 + $0x20] sm:$0xff]
    %v325 = vld [vmem:[%s3 + $0x28] sm:$0xff]
    %v326 = vld [vmem:[%s3 + $0x30] sm:$0xff]
    %v327 = vld [vmem:[%s3 + $0x38] sm:$0xff]
    %v328 = vld [vmem:[%s3 + $0x40] sm:$0xff]
    %v329 = vld [vmem:[%s3 + $0x48] sm:$0xff]
    %v330 = vld [vmem:[%s3 + $0x50] sm:$0xff]
    %v331 = vld [vmem:[%s3 + $0x58] sm:$0xff]
    %v332 = vld [vmem:[%s3 + $0x60] sm:$0xff]
    %v333 = vld [vmem:[%s3 + $0x68] sm:$0xff]
    %v334 = vld [vmem:[%s3 + $0x70] sm:$0xff]
    %v335 = vld [vmem:[%s3 + $0x78] sm:$0xff]
    %v336 = vld [vmem:[%s2] sm:$0x1]
    %v338 = vlaneseq
    %v339 = vshrl.u32 %v338, 7
    %v340 = vsub.s32 0, %v339
    %v341 = vrot.slane %v336, %v340
    %v343 = vadd.f32 %v320, %v341
    %v344 = vadd.f32 %v321, %v341
    %v345 = vadd.f32 %v322, %v341
    %v346 = vadd.f32 %v323, %v341
    %v347 = vadd.f32 %v324, %v341
    %v348 = vadd.f32 %v325, %v341
    %v349 = vadd.f32 %v326, %v341
    %v350 = vadd.f32 %v327, %v341
    %v351 = vadd.f32 %v328, %v341
    %v352 = vadd.f32 %v329, %v341
    %v353 = vadd.f32 %v330, %v341
    %v354 = vadd.f32 %v331, %v341
    %v355 = vadd.f32 %v332, %v341
    %v356 = vadd.f32 %v333, %v341
    %v357 = vadd.f32 %v334, %v341
    %v358 = vadd.f32 %v335, %v341
    %v359 = vtanh.pop %v343
    %v360 = vtanh.pop %v344
    %v361 = vtanh.pop %v345
    %v362 = vtanh.pop %v346
    %v363 = vtanh.pop %v347
    %v364 = vtanh.pop %v348
    %v365 = vtanh.pop %v349
    %v366 = vtanh.pop %v350
    %v367 = vtanh.pop %v351
    %v368 = vtanh.pop %v352
    %v369 = vtanh.pop %v353
    %v370 = vtanh.pop %v354
    %v371 = vtanh.pop %v355
    %v372 = vtanh.pop %v356
    %v373 = vtanh.pop %v357
    %v374 = vtanh.pop %v358
    %375 = vst [vmem:[%s3] sm:$0xff] %v359
    %376 = vst [vmem:[%s3 + $0x8] sm:$0xff] %v360
    %377 = vst [vmem:[%s3 + $0x10] sm:$0xff] %v361
    %378 = vst [vmem:[%s3 + $0x18] sm:$0xff] %v362
    %379 = vst [vmem:[%s3 + $0x20] sm:$0xff] %v363
    %380 = vst [vmem:[%s3 + $0x28] sm:$0xff] %v364
    %381 = vst [vmem:[%s3 + $0x30] sm:$0xff] %v365
    %382 = vst [vmem:[%s3 + $0x38] sm:$0xff] %v366
    %383 = vst [vmem:[%s3 + $0x40] sm:$0xff] %v367
    %384 = vst [vmem:[%s3 + $0x48] sm:$0xff] %v368
    %385 = vst [vmem:[%s3 + $0x50] sm:$0xff] %v369
    %386 = vst [vmem:[%s3 + $0x58] sm:$0xff] %v370
    %387 = vst [vmem:[%s3 + $0x60] sm:$0xff] %v371
    %388 = vst [vmem:[%s3 + $0x68] sm:$0xff] %v372
    %389 = vst [vmem:[%s3 + $0x70] sm:$0xff] %v373
    %390 = vst [vmem:[%s3 + $0x78] sm:$0xff] %v374
  $region21: #{graph_convolution.1} parent=0 // pred_fallthru
    _
  // Predicated region
  $region22: #{graph_convolution.1} parent=0 // pred_check
    _
  $region23: #{graph_convolution.1} parent=0 // pred_check_branch
    %392 = sbr.rel (0) target = $region25
  $region24: #{graph_convolution.1} parent=0 // pred_region
    _
  $region25: #{graph_convolution.1} parent=0 // pred_fallthru
    _
  // Predicated region
  $region26: #{graph_convolution.1} parent=0 // pred_check
    _
  $region27: #{graph_convolution.1} parent=0 // pred_check_branch
    %394 = sbr.rel (0) target = $region29
  $region28: #{graph_convolution.1} parent=0 // pred_region
    _
  $region29: #{graph_convolution.1} parent=0 // pred_fallthru
    _

</llo_original>
